<compile_context>
chip_gen: v7x
topology: tpu7x:2x2x1
jax: 0.10.0
libtpu: 0.0.40
codegen_flags: <defaults>
</compile_context>

<pallas_src>
import jax
import jax.numpy as jnp
from jax.experimental import pallas as pl
from jax.experimental.pallas import tpu as pltpu


def _round_up(x, m):
    return ((x + m - 1) // m) * m


def _make_glimpse_kernel(has_bias):
    def kernel(*refs):
        if has_bias:
            (ref_ref, encq_ref, wref_ref, v_ref, bias_ref,
             o_ref, m_sc, l_sc, acc_sc) = refs
        else:
            (ref_ref, encq_ref, wref_ref, v_ref,
             o_ref, m_sc, l_sc, acc_sc) = refs
            bias_ref = None

        s_idx = pl.program_id(1)

        @pl.when(s_idx == 0)
        def _():
            m_sc[...] = jnp.full(m_sc.shape, -jnp.inf, m_sc.dtype)
            l_sc[...] = jnp.zeros(l_sc.shape, l_sc.dtype)
            acc_sc[...] = jnp.zeros(acc_sc.shape, acc_sc.dtype)

        Bt, St, Hp = ref_ref.shape
        ref_blk = ref_ref[...]                                 # (Bt, St, Hp) bf16

        # One (Bt*St, Hp) @ (Hp, Hp) bf16 matmul, f32 accumulate.  S%8==0 and
        # Hp%128==0, so both reshapes are free views (no VMEM copies).
        enc_ref = jnp.dot(ref_blk.reshape(Bt * St, Hp), wref_ref[...],
                          preferred_element_type=jnp.float32)
        enc_ref = enc_ref.reshape(Bt, St, Hp)

        # TODO(synk): on v6e/v7x cast (enc_ref + enc_q) to bf16 before tanh if
        # the bundle shows EUP binding after the bf16 ref change (not on v5e).
        t = jnp.tanh(enc_ref + encq_ref[...][:, None, :])          # (Bt, St, Hp)
        scores = jnp.sum(v_ref[...].reshape(1, 1, Hp) * t, axis=-1)  # (Bt, St)
        if has_bias:
            scores = scores + bias_ref[...]          # mask/padding bias pre-scaled

        # Online softmax over the (possibly tiled) sequence axis.
        m_prev = m_sc[...]                                          # (Bt, 1)
        m_new = jnp.maximum(m_prev, jnp.max(scores, axis=-1, keepdims=True))
        alpha = jnp.exp(m_prev - m_new)                             # (Bt, 1)
        p = jnp.exp(scores - m_new)                                 # (Bt, St)
        l_sc[...] = alpha * l_sc[...] + jnp.sum(p, axis=-1, keepdims=True)

        # Weighted ref sum: VPU mul + XLU sublane reduce, f32 accumulate (kept
        # off the MXU -- an M=1 matmul per batch row would be slower).
        wsum = jnp.sum(ref_blk.astype(jnp.float32) * p[:, :, None], axis=1)
        acc_sc[...] = alpha * acc_sc[...] + wsum
        m_sc[...] = m_new

        @pl.when(s_idx == pl.num_programs(1) - 1)
        def _():
            o_ref[...] = (acc_sc[...] *
                          pl.reciprocal(l_sc[...], approx=True)).astype(o_ref.dtype)

    return kernel


def _vmem_limits():
    """Generation-aware VMEM budget + explicit scoped-VMEM limit."""
    try:
        cap = int(pltpu.get_tpu_info().vmem_capacity_bytes)
    except Exception:
        cap = 64 << 20                 # conservative fallback (v7x per-core VMEM)
    vmem_limit = min((cap * 3) // 4, 100 << 20)
    budget = int(vmem_limit * 0.85)    # headroom for compiler-internal scratch
    return budget, vmem_limit


def _tile_bytes(bt, st, hp, has_bias):
    """Per-step VMEM estimate including in-kernel f32 intermediates."""
    ref_blk = bt * st * hp
    return (2 * hp * hp * 2 + 2 * hp * 4          # W_ref^T (dbl-buf, bf16) + v_g
            + 2 * ref_blk * 2                     # ref block, bf16, double-buffered
            + 3 * ref_blk * 4                     # enc_ref, tanh temp, f32 ref upcast
            + 2 * bt * hp * 4 + 2 * bt * hp * 4   # enc_q + output blocks (dbl-buf)
            + bt * hp * 4                         # acc scratch
            + (2 * bt * st * 4 if has_bias else 0)
            + 6 * bt * st * 4                     # scores / exp temps
            + (1 << 14))                          # small slack


def _choose_tiles(B, S, Hp, has_bias, budget):
    """Returns (Bt, St, Sp). Bt sits on the sublane axis of 2-D blocks:
    must be a multiple of 8 or equal to B."""
    bt_cands = [d for d in range(B, 0, -1) if B % d == 0 and (d % 8 == 0 or d == B)]

    # Pass 1: whole (padded-to-8) sequence per step, largest Bt that fits VMEM,
    # preferring >=4 grid steps so both v7x TCs get >=2 pipelined steps each.
    s_full = _round_up(S, 8)
    feasible = [bt for bt in bt_cands
                if _tile_bytes(bt, s_full, Hp, has_bias) <= budget]
    if feasible:
        def pick(min_steps):
            ok = [bt for bt in feasible if B // bt >= min_steps]
            return max(ok) if ok else None
        bt = pick(4) or pick(2) or max(feasible)
        return bt, s_full, s_full

    # Pass 2: tile the sequence (online softmax).  St is on the lane axis of
    # the bias block, so it must be a multiple of 128.
    for st in (2048, 1024, 512, 256, 128):
        if st >= s_full:
            continue
        ok = [bt for bt in bt_cands if _tile_bytes(bt, st, Hp, True) <= budget]
        if ok:
            sweet = [bt for bt in ok if bt * st <= 2048]
            bt = max(sweet) if sweet else min(ok)
            return bt, st, _round_up(S, st)

    # Fallback: smallest legal tile.
    st = 128 if s_full > 128 else s_full
    return min(bt_cands), st, _round_up(S, st)


def glimpse_forward(ref, query, w_ref_conv, w_q, v, mask=None, current_task=None):
    """ref: (B,S,H), query: (B,H), w_ref_conv: (H,H,1) Conv1d weight (no bias),
       w_q: (H,H) Linear weight (no bias), v: (H,)."""
    B, S, H = ref.shape
    Hp = _round_up(H, 128)                         # lane-dense H

    has_mask = (mask is not None) and (current_task is not None)
    budget, vmem_limit = _vmem_limits()
    Bt, St, Sp = _choose_tiles(B, S, Hp, has_mask, budget)
    need_bias = has_mask or (Sp > S)

    # ref streamed as bf16; padded S rows are zero and masked via the bias.
    ref_p = jnp.pad(ref.astype(jnp.bfloat16), ((0, 0), (0, Sp - S), (0, Hp - H)))
    # enc_q hoisted: one XLA matmul for the whole batch; W_q never enters VMEM.
    enc_q = jnp.dot(query.astype(jnp.float32),
                    jnp.transpose(w_q.astype(jnp.float32)))
    enc_q_p = jnp.pad(enc_q, ((0, 0), (0, Hp - H)))
    wref_t = jnp.transpose(w_ref_conv[:, :, 0]).astype(jnp.bfloat16)  # (H_in, H_out)
    wref_p = jnp.pad(wref_t, ((0, Hp - H), (0, Hp - H)))
    v_p = jnp.pad(v.astype(jnp.float32), (0, Hp - H)).reshape(1, Hp)

    operands = [ref_p, enc_q_p, wref_p, v_p]
    in_specs = [
        pl.BlockSpec((Bt, St, Hp), lambda b, s: (b, s, 0)),   # ref (bf16)
        pl.BlockSpec((Bt, Hp), lambda b, s: (b, 0)),          # enc_q (precomputed)
        # Constant index_map => fetched once.  TODO(synk): pipeline_mode=
        # pl.Buffered(1) would reclaim the second weight buffer if VMEM-bound.
        pl.BlockSpec((Hp, Hp), lambda b, s: (0, 0)),          # W_ref^T (bf16)
        pl.BlockSpec((1, Hp), lambda b, s: (0, 0)),           # v_g
    ]
    if need_bias:
        if has_mask:
            bias = -1.0e8 * (jnp.asarray(mask, jnp.float32)
                             - jnp.asarray(current_task, jnp.float32))
            bias = jnp.broadcast_to(bias, (B, S)).astype(jnp.float32)
        else:
            bias = jnp.zeros((B, S), jnp.float32)
        # Padded sequence positions get a large negative bias -> ~zero attention.
        bias_p = jnp.pad(bias, ((0, 0), (0, Sp - S)), constant_values=-1.0e9)
        operands.append(bias_p)
        in_specs.append(pl.BlockSpec((Bt, St), lambda b, s: (b, s)))

    out = pl.pallas_call(
        _make_glimpse_kernel(need_bias),
        out_shape=jax.ShapeDtypeStruct((B, Hp), jnp.float32),
        grid_spec=pltpu.PrefetchScalarGridSpec(
            num_scalar_prefetch=0,
            grid=(B // Bt, Sp // St),
            in_specs=in_specs,
            out_specs=pl.BlockSpec((Bt, Hp), lambda b, s: (b, 0)),
            scratch_shapes=[
                pltpu.VMEM((Bt, 1), jnp.float32),    # running max m
                pltpu.VMEM((Bt, 1), jnp.float32),    # running denom l
                pltpu.VMEM((Bt, Hp), jnp.float32),   # running weighted ref sum
            ]),
        compiler_params=pltpu.CompilerParams(
            dimension_semantics=("parallel", "arbitrary"),
            vmem_limit_bytes=vmem_limit),
    )(*operands)
    return out[:, :H]


def glimpse_reference(ref, query, w_ref_conv, w_q, v, mask=None, current_task=None):
    enc_ref = jnp.einsum("bsh,oh->bso", ref, w_ref_conv[:, :, 0])
    enc_q = (query @ w_q.T)[:, None, :]
    scores = jnp.sum(v * jnp.tanh(enc_ref + enc_q), axis=-1)
    if mask is not None and current_task is not None:
        scores = scores - 1.0e8 * (mask - current_task)
    attn = jax.nn.softmax(scores, axis=-1)
    return jnp.sum(ref * attn[:, :, None], axis=1)


if __name__ == "__main__":
    B, S, H = 2, 8, 32
    key = jax.random.PRNGKey(0)
    k1, k2, k3, k4, k5 = jax.random.split(key, 5)

    # Deterministic parameters (shapes from Glimpse.__init__).
    w_ref_conv = jax.random.normal(k1, (H, H, 1), jnp.float32) * 0.1  # Conv1d weight
    w_q = jax.random.normal(k2, (H, H), jnp.float32) * 0.1            # Linear weight
    v = jax.random.normal(k3, (H,), jnp.float32)                      # v_g

    ref = jax.random.normal(k4, (B, S, H), jnp.float32)
    query = jax.random.normal(k5, (B, H), jnp.float32)

    out = glimpse_forward(ref, query, w_ref_conv, w_q, v)
    out = jax.block_until_ready(out)

    expected = glimpse_reference(ref, query, w_ref_conv, w_q, v)
    assert out.shape == (B, H)
    # Tolerance loosened because ref and the MXU operands are bf16 (f32 accumulate).
    assert jnp.allclose(out, expected, atol=5e-2, rtol=5e-2), (
        float(jnp.max(jnp.abs(out - expected))))

    print("KERNEL_OK")
</pallas_src>

<mosaic_0001>
module attributes {stable_mosaic.version = 11 : i64} {
  func.func @kernel(%arg0: i32, %arg1: i32, %arg2: memref<2x8x128xbf16, #tpu.memory_space<vmem>>, %arg3: memref<2x128xf32, #tpu.memory_space<vmem>>, %arg4: memref<128x128xbf16, #tpu.memory_space<vmem>>, %arg5: memref<1x128xf32, #tpu.memory_space<vmem>>, %arg6: memref<2x128xf32, #tpu.memory_space<vmem>>, %arg7: memref<2x1xf32, #tpu.memory_space<vmem>>, %arg8: memref<2x1xf32, #tpu.memory_space<vmem>>, %arg9: memref<2x128xf32, #tpu.memory_space<vmem>>) attributes {dimension_semantics = [#tpu.dimension_semantics<parallel>, #tpu.dimension_semantics<arbitrary>], iteration_bounds = array<i64: 1, 1>, scalar_prefetch = 0 : i64, scratch_operands = 3 : i64, tpu.core_type = #tpu.core_type<tc>, window_params = [{transform_indices = @transform_0, window_bounds = array<i64: 2, 8, 128>}, {transform_indices = @transform_1, window_bounds = array<i64: 2, 128>}, {pipeline_mode = #tpu.pipeline_mode<synchronous>, transform_indices = @transform_2, window_bounds = array<i64: 128, 128>}, {pipeline_mode = #tpu.pipeline_mode<synchronous>, transform_indices = @transform_3, window_bounds = array<i64: 1, 128>}, {transform_indices = @transform_4, window_bounds = array<i64: 2, 128>}]} {
    %c0_i32 = arith.constant 0 : i32
    %0 = arith.cmpi eq, %arg1, %c0_i32 : i32
    %1 = arith.extui %0 : i1 to i32
    %c0_i32_0 = arith.constant 0 : i32
    %2 = arith.cmpi ne, %1, %c0_i32_0 : i32
    scf.if %2 {
      %cst_27 = arith.constant 0xFF800000 : f32
      %47 = vector.broadcast %cst_27 : f32 to vector<2x1xf32>
      %c0_28 = arith.constant 0 : index
      %c0_29 = arith.constant 0 : index
      %48 = vector.load %arg7[%c0_28, %c0_29] : memref<2x1xf32, #tpu.memory_space<vmem>>, vector<2x1xf32>
      tpu.vector_store %arg7[%c0_28, %c0_29], %47 {strides = array<i32>} : memref<2x1xf32, #tpu.memory_space<vmem>>, vector<2x1xf32>,
      %cst_30 = arith.constant 0.000000e+00 : f32
      %49 = vector.broadcast %cst_30 : f32 to vector<2x1xf32>
      %c0_31 = arith.constant 0 : index
      %c0_32 = arith.constant 0 : index
      %50 = vector.load %arg8[%c0_31, %c0_32] : memref<2x1xf32, #tpu.memory_space<vmem>>, vector<2x1xf32>
      tpu.vector_store %arg8[%c0_31, %c0_32], %49 {strides = array<i32>} : memref<2x1xf32, #tpu.memory_space<vmem>>, vector<2x1xf32>,
      %cst_33 = arith.constant 0.000000e+00 : f32
      %51 = vector.broadcast %cst_33 : f32 to vector<2x128xf32>
      %c0_34 = arith.constant 0 : index
      %c0_35 = arith.constant 0 : index
      %52 = vector.load %arg9[%c0_34, %c0_35] : memref<2x128xf32, #tpu.memory_space<vmem>>, vector<2x128xf32>
      tpu.vector_store %arg9[%c0_34, %c0_35], %51 {strides = array<i32>} : memref<2x128xf32, #tpu.memory_space<vmem>>, vector<2x128xf32>,
    } else {
    }
    %c0 = arith.constant 0 : index
    %c0_1 = arith.constant 0 : index
    %c0_2 = arith.constant 0 : index
    %3 = vector.load %arg2[%c0, %c0_1, %c0_2] : memref<2x8x128xbf16, #tpu.memory_space<vmem>>, vector<2x8x128xbf16>
    %4 = vector.shape_cast %3 : vector<2x8x128xbf16> to vector<16x128xbf16>
    %c0_3 = arith.constant 0 : index
    %c0_4 = arith.constant 0 : index
    %5 = vector.load %arg4[%c0_3, %c0_4] : memref<128x128xbf16, #tpu.memory_space<vmem>>, vector<128x128xbf16>
    %cst = arith.constant dense<0.000000e+00> : vector<16x128xf32>
    %6 = tpu.matmul %4, %5, %cst {dimension_numbers = #tpu.dot_dimension_numbers<[1], [0], [0], [1], [0, 0, 1, 1], [], []>} : vector<16x128xbf16>, vector<128x128xbf16>, vector<16x128xf32> -> vector<16x128xf32>
    %7 = vector.shape_cast %6 : vector<16x128xf32> to vector<2x8x128xf32>
    %c0_5 = arith.constant 0 : index
    %c0_6 = arith.constant 0 : index
    %8 = vector.load %arg3[%c0_5, %c0_6] : memref<2x128xf32, #tpu.memory_space<vmem>>, vector<2x128xf32>
    %9 = vector.shape_cast %8 : vector<2x128xf32> to vector<2x1x128xf32>
    %10 = vector.broadcast %9 : vector<2x1x128xf32> to vector<2x8x128xf32>
    %11 = arith.addf %7, %10 : vector<2x8x128xf32>
    %12 = math.tanh %11 : vector<2x8x128xf32>
    %c0_7 = arith.constant 0 : index
    %c0_8 = arith.constant 0 : index
    %13 = vector.load %arg5[%c0_7, %c0_8] : memref<1x128xf32, #tpu.memory_space<vmem>>, vector<1x128xf32>
    %14 = vector.shape_cast %13 : vector<1x128xf32> to vector<1x1x128xf32>
    %15 = vector.broadcast %14 : vector<1x1x128xf32> to vector<2x8x128xf32>
    %16 = arith.mulf %15, %12 : vector<2x8x128xf32>
    %cst_9 = arith.constant dense<0.000000e+00> : vector<2x8xf32>
    %17 = vector.multi_reduction <add>, %16, %cst_9 [2] : vector<2x8x128xf32> to vector<2x8xf32>
    %c0_10 = arith.constant 0 : index
    %c0_11 = arith.constant 0 : index
    %18 = vector.load %arg7[%c0_10, %c0_11] : memref<2x1xf32, #tpu.memory_space<vmem>>, vector<2x1xf32>
    %cst_12 = arith.constant dense<0xFF800000> : vector<2xf32>
    %19 = vector.multi_reduction <maximumf>, %17, %cst_12 [1] : vector<2x8xf32> to vector<2xf32>
    %20 = vector.shape_cast %19 : vector<2xf32> to vector<2x1xf32>
    %21 = arith.maximumf %18, %20 : vector<2x1xf32>
    %22 = arith.subf %18, %21 : vector<2x1xf32>
    %23 = math.exp %22 : vector<2x1xf32>
    %24 = vector.broadcast %21 : vector<2x1xf32> to vector<2x8xf32>
    %25 = arith.subf %17, %24 : vector<2x8xf32>
    %26 = math.exp %25 : vector<2x8xf32>
    %c0_13 = arith.constant 0 : index
    %c0_14 = arith.constant 0 : index
    %27 = vector.load %arg8[%c0_13, %c0_14] : memref<2x1xf32, #tpu.memory_space<vmem>>, vector<2x1xf32>
    %28 = arith.mulf %23, %27 : vector<2x1xf32>
    %cst_15 = arith.constant dense<0.000000e+00> : vector<2xf32>
    %29 = vector.multi_reduction <add>, %26, %cst_15 [1] : vector<2x8xf32> to vector<2xf32>
    %30 = vector.shape_cast %29 : vector<2xf32> to vector<2x1xf32>
    %31 = arith.addf %28, %30 : vector<2x1xf32>
    %c0_16 = arith.constant 0 : index
    %c0_17 = arith.constant 0 : index
    %32 = vector.load %arg8[%c0_16, %c0_17] : memref<2x1xf32, #tpu.memory_space<vmem>>, vector<2x1xf32>
    tpu.vector_store %arg8[%c0_16, %c0_17], %31 {strides = array<i32>} : memref<2x1xf32, #tpu.memory_space<vmem>>, vector<2x1xf32>,
    %33 = arith.extf %3 : vector<2x8x128xbf16> to vector<2x8x128xf32>
    %34 = vector.shape_cast %26 : vector<2x8xf32> to vector<2x8x1xf32>
    %35 = vector.broadcast %34 : vector<2x8x1xf32> to vector<2x8x128xf32>
    %36 = arith.mulf %33, %35 : vector<2x8x128xf32>
    %cst_18 = arith.constant dense<0.000000e+00> : vector<2x128xf32>
    %37 = vector.multi_reduction <add>, %36, %cst_18 [1] : vector<2x8x128xf32> to vector<2x128xf32>
    %c0_19 = arith.constant 0 : index
    %c0_20 = arith.constant 0 : index
    %38 = vector.load %arg9[%c0_19, %c0_20] : memref<2x128xf32, #tpu.memory_space<vmem>>, vector<2x128xf32>
    %39 = vector.broadcast %23 : vector<2x1xf32> to vector<2x128xf32>
    %40 = arith.mulf %39, %38 : vector<2x128xf32>
    %41 = arith.addf %40, %37 : vector<2x128xf32>
    %c0_21 = arith.constant 0 : index
    %c0_22 = arith.constant 0 : index
    %42 = vector.load %arg9[%c0_21, %c0_22] : memref<2x128xf32, #tpu.memory_space<vmem>>, vector<2x128xf32>
    tpu.vector_store %arg9[%c0_21, %c0_22], %41 {strides = array<i32>} : memref<2x128xf32, #tpu.memory_space<vmem>>, vector<2x128xf32>,
    %c0_23 = arith.constant 0 : index
    %c0_24 = arith.constant 0 : index
    %43 = vector.load %arg7[%c0_23, %c0_24] : memref<2x1xf32, #tpu.memory_space<vmem>>, vector<2x1xf32>
    tpu.vector_store %arg7[%c0_23, %c0_24], %21 {strides = array<i32>} : memref<2x1xf32, #tpu.memory_space<vmem>>, vector<2x1xf32>,
    %c0_i32_25 = arith.constant 0 : i32
    %44 = arith.cmpi eq, %arg1, %c0_i32_25 : i32
    %45 = arith.extui %44 : i1 to i32
    %c0_i32_26 = arith.constant 0 : i32
    %46 = arith.cmpi ne, %45, %c0_i32_26 : i32
    scf.if %46 {
      %c0_27 = arith.constant 0 : index
      %c0_28 = arith.constant 0 : index
      %47 = vector.load %arg9[%c0_27, %c0_28] : memref<2x128xf32, #tpu.memory_space<vmem>>, vector<2x128xf32>
      %c0_29 = arith.constant 0 : index
      %c0_30 = arith.constant 0 : index
      %48 = vector.load %arg8[%c0_29, %c0_30] : memref<2x1xf32, #tpu.memory_space<vmem>>, vector<2x1xf32>
      %49 = tpu.reciprocal %48 {approx = true} : vector<2x1xf32> -> vector<2x1xf32>
      %50 = vector.broadcast %49 : vector<2x1xf32> to vector<2x128xf32>
      %51 = arith.mulf %47, %50 : vector<2x128xf32>
      %c0_31 = arith.constant 0 : index
      %c0_32 = arith.constant 0 : index
      %52 = vector.load %arg6[%c0_31, %c0_32] : memref<2x128xf32, #tpu.memory_space<vmem>>, vector<2x128xf32>
      tpu.vector_store %arg6[%c0_31, %c0_32], %51 {strides = array<i32>} : memref<2x128xf32, #tpu.memory_space<vmem>>, vector<2x128xf32>,
    } else {
    }
    return
  }
  func.func @transform_0(%arg0: i32, %arg1: i32) -> (i32, i32, i32) {
    %c0_i32 = arith.constant 0 : i32
    %c0_i32_0 = arith.constant 0 : i32
    return %arg0, %arg1, %c0_i32 : i32, i32, i32
  }
  func.func @transform_1(%arg0: i32, %arg1: i32) -> (i32, i32) {
    %c0_i32 = arith.constant 0 : i32
    %c0_i32_0 = arith.constant 0 : i32
    return %arg0, %c0_i32 : i32, i32
  }
  func.func @transform_2(%arg0: i32, %arg1: i32) -> (i32, i32) {
    %c0_i32 = arith.constant 0 : i32
    %c0_i32_0 = arith.constant 0 : i32
    %c0_i32_1 = arith.constant 0 : i32
    return %c0_i32, %c0_i32_0 : i32, i32
  }
  func.func @transform_3(%arg0: i32, %arg1: i32) -> (i32, i32) {
    %c0_i32 = arith.constant 0 : i32
    %c0_i32_0 = arith.constant 0 : i32
    %c0_i32_1 = arith.constant 0 : i32
    return %c0_i32, %c0_i32_0 : i32, i32
  }
  func.func @transform_4(%arg0: i32, %arg1: i32) -> (i32, i32) {
    %c0_i32 = arith.constant 0 : i32
    %c0_i32_0 = arith.constant 0 : i32
    return %arg0, %c0_i32 : i32, i32
  }
}

</mosaic_0001>

<llo_original>
// kernel: tpu_custom_call.1
$region0: #{tpu_custom_call.1}
  #allocation0 [shape = 'u32[]', space=smem, size = 0x4, offset = 0x4, fixed_abs, tag = 'smem constant byte address 0x4 - core index']
  #allocation1 [shape = 'u32[144,128]{1,0:T(1,128)}', space=vmem, size = 0x12000, scoped, tag = 'internal scratch']
  #allocation2 [shape = 'f32[2,1]{1,0:T(2,128)}', space=vmem, size = 0x400, scoped, tag = 'scratch operand']
  #allocation3 [shape = 'f32[2,1]{1,0:T(2,128)}', space=vmem, size = 0x400, scoped, tag = 'scratch operand']
  #allocation4 [shape = 'f32[2,128]{1,0:T(2,128)}', space=vmem, size = 0x400, scoped, tag = 'scratch operand']
  %s0 = inlined_call_operand.hbm [shape: bf16[2,8,128], index: 0, kind: input, shape index: {}]
  %s1 = inlined_call_operand.vmem [shape: f32[2,128], index: 1, kind: input, shape index: {}]
  %s2 = inlined_call_operand.hbm [shape: bf16[128,128], index: 2, kind: input, shape index: {}]
  %s3 = inlined_call_operand.vmem [shape: f32[1,128], index: 3, kind: input, shape index: {}]
  %s4 = inlined_call_operand.hbm [shape: f32[2,128], index: 4, kind: output, shape index: {}]
  %s5 = sld [smem:[#allocation0]]
  $region42: #{tpu_custom_call.1} parent=0
    _
  %s7 = ssub.s32 1, %s5
  %s8 = scalar_select 0, %s7, %s5
  $region1: #{tpu_custom_call.1} parent=0
    #allocation5 [shape = 'u8[4096]{0}', space=vmem, size = 0x1000, scoped, tag = 'input window, operand 0, single buffered']
    #allocation6 [shape = 's32[1]{0}', space=sflag, size = 0x4, scoped, tag = 'scoped memory for tpu_custom_call.1']
    #allocation7 [shape = 's32[1]{0}', space=sflag, size = 0x4, scoped, tag = 'scoped memory for tpu_custom_call.1']
    #allocation8 [shape = 'u8[32768]{0}', space=vmem, size = 0x8000, scoped, tag = 'input window, operand 2, single buffered']
    #allocation9 [shape = 's32[1]{0}', space=sflag, size = 0x4, scoped, tag = 'scoped memory for tpu_custom_call.1']
    #allocation10 [shape = 'u8[1024]{0}', space=vmem, size = 0x400, scoped, tag = 'output window, operand 0, single buffered']
    %9 = vsyncpa [#allocation6], 0
    %10 = vsyncpa [#allocation9], 0
    %11 = vsyncpa [#allocation7], 0
    // Predicated region
    $region2: #{tpu_custom_call.1} parent=1 // pred_check
      _
    $region3: #{tpu_custom_call.1} parent=1 // pred_check_branch
      %13 = sbr.rel (0) target = $region5
    $region4: #{tpu_custom_call.1} parent=1 // pred_region
      %s15 = ssub.s32 128, 128
      %16 = vsyncadd [#allocation6], %s15
      %s17 = sshll.u32 [#allocation5], 4
      %s18 = int_to_ptr.vmem [resolvable:$true] %s17
      %23 = dma.hbm_to_vmem [thread:$0]  %s0, 128, %s18, [#allocation6], 64, 64, 4
    $region5: #{tpu_custom_call.1} parent=1 // pred_fallthru
      _
    // Predicated region
    $region6: #{tpu_custom_call.1} parent=1 // pred_check
      _
    $region7: #{tpu_custom_call.1} parent=1 // pred_check_branch
      %25 = sbr.rel (0) target = $region9
    $region8: #{tpu_custom_call.1} parent=1 // pred_region
      _
    $region9: #{tpu_custom_call.1} parent=1 // pred_fallthru
      _
    // Predicated region
    $region10: #{tpu_custom_call.1} parent=1 // pred_check
      _
    $region11: #{tpu_custom_call.1} parent=1 // pred_check_branch
      %27 = sbr.rel (0) target = $region13
    $region12: #{tpu_custom_call.1} parent=1 // pred_region
      %s29 = ssub.s32 1024, 1024
      %30 = vsyncadd [#allocation9], %s29
      %s31 = sshll.u32 [#allocation8], 4
      %s32 = int_to_ptr.vmem [resolvable:$true] %s31
      %37 = dma.hbm_to_vmem [thread:$0]  %s2, 1024, %s32, [#allocation9], 64, 64, 4
    $region13: #{tpu_custom_call.1} parent=1 // pred_fallthru
      _
    // Predicated region
    $region14: #{tpu_custom_call.1} parent=1 // pred_check
      _
    $region15: #{tpu_custom_call.1} parent=1 // pred_check_branch
      %39 = sbr.rel (0) target = $region17
    $region16: #{tpu_custom_call.1} parent=1 // pred_region
      _
    $region17: #{tpu_custom_call.1} parent=1 // pred_fallthru
      _
    // Predicated region
    $region18: #{tpu_custom_call.1} parent=1 // pred_check
      _
    $region19: #{tpu_custom_call.1} parent=1 // pred_check_branch
      %41 = sbr.rel (0) target = $region21
    $region20: #{tpu_custom_call.1} parent=1 // pred_region
      %42 = dma.done [#allocation6], 128
    $region21: #{tpu_custom_call.1} parent=1 // pred_fallthru
      _
    // Predicated region
    $region22: #{tpu_custom_call.1} parent=1 // pred_check
      _
    $region23: #{tpu_custom_call.1} parent=1 // pred_check_branch
      %44 = sbr.rel (0) target = $region25
    $region24: #{tpu_custom_call.1} parent=1 // pred_region
      %45 = dma.done [#allocation9], 1024
    $region25: #{tpu_custom_call.1} parent=1 // pred_fallthru
      _
    %p47 = scmp.eq.s32.totalorder 0, 0
    // Predicated region
    $region26: #{tpu_custom_call.1} parent=1 // pred_check
      %p48 = pneg %p47
    $region27: #{tpu_custom_call.1} parent=1 // pred_check_branch
      %50 = sbr.rel (%p48) target = $region29
    $region28: #{tpu_custom_call.1} parent=1 // pred_region
      %vm51 = vcmask 1024
      %52 = vst.msk [vmem:[#allocation2] sm:$0x3] %vm51, -inf
      %53 = vst.msk [vmem:[#allocation3] sm:$0x3] %vm51, 0.0
      %54 = vst [vmem:[#allocation4] sm:$0x3] 0.0
    $region29: #{tpu_custom_call.1} parent=1 // pred_fallthru
      _
    %v55 = vld [vmem:[#allocation5] sm:$0xf]
    %v56 = vld [vmem:[#allocation5 + $0x4] sm:$0xf]
    %v57 = vld [vmem:[#allocation8] sm:$0xf]
    %v58 = vld [vmem:[#allocation8 + $0x4] sm:$0xf]
    %v59 = vld [vmem:[#allocation8 + $0x8] sm:$0xf]
    %v60 = vld [vmem:[#allocation8 + $0xc] sm:$0xf]
    %v61 = vld [vmem:[#allocation8 + $0x10] sm:$0xf]
    %v62 = vld [vmem:[#allocation8 + $0x14] sm:$0xf]
    %v63 = vld [vmem:[#allocation8 + $0x18] sm:$0xf]
    %v64 = vld [vmem:[#allocation8 + $0x1c] sm:$0xf]
    %v65 = vld [vmem:[#allocation8 + $0x20] sm:$0xf]
    %v66 = vld [vmem:[#allocation8 + $0x24] sm:$0xf]
    %v67 = vld [vmem:[#allocation8 + $0x28] sm:$0xf]
    %v68 = vld [vmem:[#allocation8 + $0x2c] sm:$0xf]
    %v69 = vld [vmem:[#allocation8 + $0x30] sm:$0xf]
    %v70 = vld [vmem:[#allocation8 + $0x34] sm:$0xf]
    %v71 = vld [vmem:[#allocation8 + $0x38] sm:$0xf]
    %v72 = vld [vmem:[#allocation8 + $0x3c] sm:$0xf]
    %v75 = vunpack.c.l.b16 %v55
    %v76 = vunpack.c.l.b16 %v56
    %v77 = vpack.c.b16 %v76, %v75
    %v95 = vunpack.c.l.b16 %v57
    %v96 = vunpack.c.l.b16 %v58
    %v97 = vunpack.c.l.b16 %v59
    %v98 = vunpack.c.l.b16 %v60
    %v99 = vunpack.c.l.b16 %v61
    %v100 = vunpack.c.l.b16 %v62
    %v101 = vunpack.c.l.b16 %v63
    %v102 = vunpack.c.l.b16 %v64
    %v103 = vunpack.c.l.b16 %v65
    %v104 = vunpack.c.l.b16 %v66
    %v105 = vunpack.c.l.b16 %v67
    %v106 = vunpack.c.l.b16 %v68
    %v107 = vunpack.c.l.b16 %v69
    %v108 = vunpack.c.l.b16 %v70
    %v109 = vunpack.c.l.b16 %v71
    %v110 = vunpack.c.l.b16 %v72
    %v111 = vpack.c.b16 %v96, %v95
    %v112 = vpack.c.b16 %v98, %v97
    %v113 = vpack.c.b16 %v100, %v99
    %v114 = vpack.c.b16 %v102, %v101
    %v115 = vpack.c.b16 %v104, %v103
    %v116 = vpack.c.b16 %v106, %v105
    %v117 = vpack.c.b16 %v108, %v107
    %v118 = vpack.c.b16 %v110, %v109
    %127 = vmatprep.subr.bf16.mxu0 0
    %128 = vmatpush1.bf16.msra.mxu0 %v111
    %129 = vmatprep.subr.bf16.mxu0 0
    %130 = vmatpush1.bf16.msra.mxu0 %v112
    %131 = vmatprep.subr.bf16.mxu0 0
    %132 = vmatpush1.bf16.msra.mxu0 %v113
    %133 = vmatprep.subr.bf16.mxu0 0
    %134 = vmatpush1.bf16.msra.mxu0 %v114
    %135 = vmatprep.subr.bf16.mxu0 0
    %136 = vmatpush1.bf16.msra.mxu0 %v115
    %137 = vmatprep.subr.bf16.mxu0 0
    %138 = vmatpush1.bf16.msra.mxu0 %v116
    %139 = vmatprep.subr.bf16.mxu0 0
    %140 = vmatpush1.bf16.msra.mxu0 %v117
    %141 = vmatprep.subr.bf16.mxu0 0
    %142 = vmatpush1.bf16.msra.mxu0 %v118
    %143 = vmatprep.subr.bf16.mxu0 0
    %144 = vmatpush1.bf16.msra.mxu0 0
    %145 = vmatprep.subr.bf16.mxu0 0
    %146 = vmatpush1.bf16.msra.mxu0 0
    %147 = vmatprep.subr.bf16.mxu0 0
    %148 = vmatpush1.bf16.msra.mxu0 0
    %149 = vmatprep.subr.bf16.mxu0 0
    %150 = vmatpush1.bf16.msra.mxu0 0
    %151 = vmatprep.subr.bf16.mxu0 0
    %152 = vmatpush1.bf16.msra.mxu0 0
    %153 = vmatprep.subr.bf16.mxu0 0
    %154 = vmatpush1.bf16.msra.mxu0 0
    %155 = vmatprep.subr.bf16.mxu0 0
    %156 = vmatpush1.bf16.msra.mxu0 0
    %157 = vmatprep.subr.bf16.mxu0 0
    %158 = vmatpush1.bf16.msra.mxu0 0
    %159 = vmatprep.mubr.bf16.mxu0 0
    %160 = vmatmul.mubr.bf16.gmra.mrb[0].mxu0 %v77
    %v161 = vpop.f32.mrb[0].mxu0
    %v162 = vadd.f32 0.0, %v161
    %v163 = vpop.f32.mrb[0].mxu0
    %v164 = vpop.f32.mrb[0].mxu0
    %v165 = vadd.f32 0.0, %v164
    %v166 = vpop.f32.mrb[0].mxu0
    %167 = vdwg.mxu0
    %v168 = vld [vmem:[%s1] sm:$0x3]
    %v171 = vunpack.c.l.s4 1966171168
    %v172 = vunpack.c.0.s8 %v171
    %v173 = vlaneseq
    %v174 = vshrl.u32 %v173, 7
    %v175 = vsub.s32 %v172, %v174
    %v176 = vrot.slane %v168, %v175
    %v177 = vcombine.high %v176, %v176
    %v179 = vunpack.c.l.s4 1966171168
    %v180 = vunpack.c.0.s8 %v179
    %v181 = vlaneseq
    %v182 = vshrl.u32 %v181, 7
    %v183 = vsub.s32 %v180, %v182
    %v184 = vrot.slane %v176, %v183
    %v186 = vunpack.c.l.s4 1966171168
    %v187 = vunpack.c.0.s8 %v186
    %v188 = vlaneseq
    %v189 = vshrl.u32 %v188, 7
    %v190 = vsub.s32 %v187, %v189
    %v191 = vrot.slane %v177, %v190
    %v192 = vlaneseq
    %v193 = vshrl.u32 %v192, 7
    %v194 = vsub.s32 0, %v193
    %v195 = vrot.slane %v184, %v194
    %v196 = vlaneseq
    %v197 = vshrl.u32 %v196, 7
    %v198 = vsub.s32 0, %v197
    %v199 = vrot.slane %v191, %v198
    %v202 = vadd.f32 %v162, %v195
    %v203 = vadd.f32 %v165, %v199
    %v204 = vtanh.pop %v202
    %v205 = vtanh.pop %v203
    %v206 = vld [vmem:[%s3] sm:$0x1]
    %v208 = vlaneseq
    %v209 = vshrl.u32 %v208, 7
    %v210 = vsub.s32 0, %v209
    %v211 = vrot.slane %v206, %v210
    %v213 = vmul.f32 %v211, %v204
    %v214 = vmul.f32 %v211, %v205
    %215 = vadd.xlane.f32.xlu0 %v213
    %v216 = vpop.xlane.xlu0 %215
    %217 = vadd.xlane.f32.xlu0 %v214
    %v218 = vpop.xlane.xlu0 %217
    %v219 = vld [vmem:[#allocation2] sm:$0x3]
    %v222 = vlaneseq
    %v223 = vand.u32 %v222, 127
    %v224 = vlaneseq
    %v225 = vshrl.u32 %v224, 7
    %v226 = vsub.s32 %v223, %v225
    %v227 = vrot.slane %v216, %v226
    %v228 = vlaneseq
    %v229 = vshrl.u32 %v228, 7
    %v230 = vsub.s32 %v223, %v229
    %v231 = vrot.slane %v218, %v230
    %vm232 = vcmask 1041409
    %v233 = vsel %vm232, %v231, %v227
    %vm235 = vcmask 58368
    %v236 = vsel %vm235, %v233, -inf
    %237 = vmax.xlane.f32.xlu0 %v236
    %v238 = vpop.xlane.xlu0 %237
    %v239 = vmax.f32 %v219, %v238
    %v240 = vsub.f32 %v219, %v239
    %v241 = vmul.f32 %v240, 1.442695
    %v242 = vpow.pop %v241
    %244 = vset.pattern.permute.xlu0 0
    %245 = vperm.xlu0 %244, %v239
    %v246 = vpop.permute.xlu0 %245
    %v247 = vlaneseq
    %v248 = vshrl.u32 %v247, 7
    %v249 = vsub.s32 0, %v248
    %v250 = vrot.slane %v246, %v249
    %v251 = vlaneseq
    %v252 = vshrl.u32 %v251, 7
    %v253 = vsub.s32 1, %v252
    %v254 = vrot.slane %v246, %v253
    %v257 = vsub.f32 %v216, %v250
    %v258 = vsub.f32 %v218, %v254
    %v259 = vmul.f32 %v257, 1.442695
    %v260 = vpow.pop %v259
    %v261 = vmul.f32 %v258, 1.442695
    %v262 = vpow.pop %v261
    %v263 = vld [vmem:[#allocation3] sm:$0x3]
    %v264 = vmul.f32 %v242, %v263
    %267 = vset.pattern.permute.xlu0 0
    %268 = vperm.xlu0 %267, %v260
    %v269 = vpop.permute.xlu0 %268
    %270 = vset.pattern.permute.xlu0 0
    %271 = vperm.xlu0 %270, %v262
    %v272 = vpop.permute.xlu0 %271
    %v273 = vlaneseq
    %v274 = vshrl.u32 %v273, 7
    %v275 = vsub.s32 %v223, %v274
    %v276 = vrot.slane %v269, %v275
    %v277 = vlaneseq
    %v278 = vshrl.u32 %v277, 7
    %v279 = vsub.s32 %v223, %v278
    %v280 = vrot.slane %v272, %v279
    %v281 = vsel %vm232, %v280, %v276
    %v283 = vsel %vm235, %v281, 0.0
    %284 = vadd.xlane.f32.xlu0 %v283
    %v285 = vpop.xlane.xlu0 %284
    %v286 = vadd.f32 %v264, %v285
    %vm287 = vcmask 1024
    %288 = vst.msk [vmem:[#allocation3] sm:$0x3] %vm287, %v286
    %v289 = vunpack.c.l.bf16 %v55
    %v290 = vunpack.c.l.bf16 %v56
    %v293 = vmul.f32 %v289, %v269
    %v294 = vmul.f32 %v290, %v272
    %v295 = vrot.slane %v293, 4
    %v296 = vadd.f32 %v293, %v295
    %v297 = vrot.slane %v296, 2
    %v298 = vadd.f32 %v296, %v297
    %v299 = vrot.slane %v298, 1
    %v300 = vadd.f32 %v298, %v299
    %v301 = vrot.slane %v294, 4
    %v302 = vadd.f32 %v294, %v301
    %v303 = vrot.slane %v302, 2
    %v304 = vadd.f32 %v302, %v303
    %v305 = vrot.slane %v304, 1
    %v306 = vadd.f32 %v304, %v305
    %v307 = vld [vmem:[#allocation4] sm:$0x3]
    %309 = vset.pattern.permute.xlu0 0
    %310 = vperm.xlu0 %309, %v242
    %v311 = vpop.permute.xlu0 %310
    %v313 = vmul.f32 %v311, %v307
    %v316 = vsel %vm232, %v306, %v300
    %v318 = vadd.f32 %v313, %v316
    %319 = vst [vmem:[#allocation4] sm:$0x3] %v318
    %320 = vst.msk [vmem:[#allocation2] sm:$0x3] %vm287, %v239
    // Predicated region
    $region30: #{tpu_custom_call.1} parent=1 // pred_check
      %p321 = pneg %p47
    $region31: #{tpu_custom_call.1} parent=1 // pred_check_branch
      %323 = sbr.rel (%p321) target = $region33
    $region32: #{tpu_custom_call.1} parent=1 // pred_region
      %v324 = vld [vmem:[#allocation4] sm:$0x3]
      %v325 = vld [vmem:[#allocation3] sm:$0x3]
      %v326 = vrcp.pop %v325
      %328 = vset.pattern.permute.xlu0 0
      %329 = vperm.xlu0 %328, %v326
      %v330 = vpop.permute.xlu0 %329
      %v332 = vmul.f32 %v324, %v330
      %333 = vst [vmem:[#allocation10] sm:$0x3] %v332
    $region33: #{tpu_custom_call.1} parent=1 // pred_fallthru
      _
    // Predicated region
    $region34: #{tpu_custom_call.1} parent=1 // pred_check
      _
    $region35: #{tpu_custom_call.1} parent=1 // pred_check_branch
      %335 = sbr.rel (0) target = $region37
    $region36: #{tpu_custom_call.1} parent=1 // pred_region
      %s337 = ssub.s32 32, 32
      %338 = vsyncadd [#allocation7], %s337
      %s340 = sshll.u32 [#allocation10], 4
      %s341 = int_to_ptr.vmem [resolvable:$true] %s340
      %343 = dma.vmem_to_hbm [thread:$0]  %s341, 32, %s4, [#allocation7]
    $region37: #{tpu_custom_call.1} parent=1 // pred_fallthru
      _
    // Predicated region
    $region38: #{tpu_custom_call.1} parent=1 // pred_check
      _
    $region39: #{tpu_custom_call.1} parent=1 // pred_check_branch
      %345 = sbr.rel (0) target = $region41
    $region40: #{tpu_custom_call.1} parent=1 // pred_region
      %346 = dma.done [#allocation7], 32
    $region41: #{tpu_custom_call.1} parent=1 // pred_fallthru
      _
    %347 = vsyncpa [#allocation6], 1
    %348 = vsyncpa [#allocation9], 1
    %349 = vsyncpa [#allocation7], 1

</llo_original>
